<compile_context>
chip_gen: v7x
topology: tpu7x:2x2x1
jax: 0.10.0
libtpu: 0.0.40
codegen_flags: <defaults>
</compile_context>

<pallas_src>
import functools
import math

import jax
import jax.numpy as jnp
from jax import lax
from jax.experimental import pallas as pl
from jax.experimental.pallas import tpu as pltpu


def _round_up(a, b):
    return -(-a // b) * b


def _sublane_multiple(itemsize):
    # Sublane packing granularity: 8 rows (f32), 16 (bf16), 32 (int8/fp8).
    return 8 * max(1, 4 // int(itemsize))


# ----------------------------------------------------------------------------
# Kernel: out = dropout(x + pe[:S])   (fused, one HBM read + one HBM write)
#   x block : (ts, N*D)   pe block : (ts, D)
# ----------------------------------------------------------------------------
def _posenc_kernel(seed_ref, x_ref, pe_ref, o_ref, *, p_drop, training):
    ts, w = x_ref.shape
    d = pe_ref.shape[1]
    n_rep = w // d

    x = x_ref[...]                      # (ts, N*D) in the input dtype
    pe = pe_ref[...]                    # (ts, D), already cast to x.dtype
    if n_rep > 1:
        # Broadcast pe over the (flattened) batch axis: lane concat on-chip.
        pe = jnp.concatenate([pe] * n_rep, axis=1)
    out = x + pe

    if training and p_drop > 0.0:
        # On-chip, tiling-invariant dropout mask from a counter-based integer
        # hash keyed on (seed, global_row, col).  Pure VPU ops, so it lowers
        # on TPU *and* under interpret mode (pltpu.prng_* has no CPU lowering).
        # TODO(synk): on real hardware pltpu.prng_random_bits would shave a few
        # VPU ops/element, at the cost of interpret-mode portability.
        row = lax.broadcasted_iota(jnp.int32, (ts, w), 0) + pl.program_id(0) * ts
        col = lax.broadcasted_iota(jnp.int32, (ts, w), 1)
        h = (seed_ref[0].astype(jnp.uint32)
             + row.astype(jnp.uint32) * jnp.uint32(0x9E3779B1)
             + col.astype(jnp.uint32) * jnp.uint32(0x85EBCA77))
        h = h ^ (h >> 16)
        h = h * jnp.uint32(0x7FEB352D)
        h = h ^ (h >> 15)
        h = h * jnp.uint32(0x846CA68B)
        h = h ^ (h >> 16)
        # Drop iff h < round(p * 2^32): one unsigned compare against the raw
        # 32-bit word, then one select + one multiply (scale folded in).
        thresh = jnp.uint32(min(int(round(p_drop * 4294967296.0)), 4294967295))
        keep = h >= thresh
        scale = jnp.asarray(1.0 / (1.0 - p_drop), out.dtype)
        zero = jnp.asarray(0.0, out.dtype)
        out = out * jnp.where(keep, scale, zero)

    o_ref[...] = out.astype(o_ref.dtype)


# ----------------------------------------------------------------------------
# Tiling: biggest dtype-aligned seq tile under the VMEM budget; never require
# the tile to divide S (ragged last block is masked by Pallas); keep >= 2 grid
# steps when possible so v7x's two TensorCores both get work.
# ----------------------------------------------------------------------------
def _pick_seq_tile(S, flat_width, pe_width, itemsize,
                   vmem_budget_bytes=8 * 1024 * 1024):
    sub = _sublane_multiple(itemsize)
    lane_w = _round_up(flat_width, 128)
    lane_pe = _round_up(pe_width, 128)
    # Per seq row: double-buffered x-in + out blocks (input dtype),
    # double-buffered pe block, plus headroom for in-kernel temporaries
    # (pe broadcast copy, int32 dropout-mask math).
    bytes_per_row = (4 * lane_w * itemsize
                     + 2 * lane_pe * itemsize
                     + 3 * lane_w * 4)
    max_ts = (vmem_budget_bytes // bytes_per_row // sub) * sub
    max_ts = max(sub, max_ts)
    ts = min(S, max_ts)
    if ts >= S and S >= 2 * sub:
        # Cap so the "parallel" grid axis has at least 2 steps (v7x 2-TC split).
        ts = _round_up(-(-S // 2), sub)
    return ts


# ----------------------------------------------------------------------------
# Module buffer (mirrors the PyTorch __init__)
# ----------------------------------------------------------------------------
def make_pe_buffer(d_model, maxlen=128):
    position = jnp.arange(maxlen, dtype=jnp.float32)[:, None]            # (maxlen, 1)
    div_term = jnp.exp(
        jnp.arange(0, d_model, 2, dtype=jnp.float32)
        * (-math.log(10000.0) / d_model))                                # (ceil(D/2),)
    pe = jnp.zeros((maxlen, d_model), jnp.float32)
    pe = pe.at[:, 0::2].set(jnp.sin(position * div_term))
    pe = pe.at[:, 1::2].set(jnp.cos(position * div_term)[:, : d_model // 2])
    # torch: pe.unsqueeze(0).transpose(0, 1) -> (maxlen, 1, d_model)
    return pe[:, None, :]


# ----------------------------------------------------------------------------
# Forward wrapper
# ----------------------------------------------------------------------------
def positional_encoding_forward(x, pe_buffer, *, p_drop=0.1, training=False, seed=0):
    """x: (seq, batch, d_model); pe_buffer: (maxlen, 1, d_model)."""
    S, N, D = x.shape
    maxlen = pe_buffer.shape[0]
    assert S <= maxlen, "sequence length exceeds positional-encoding maxlen"

    W = N * D
    # Lane/sublane-dense layout: flatten (batch, d_model) onto the lane axis so
    # small batch sizes don't waste 8/N (f32) of every vreg / VMEM tile, and
    # the output stays lane-dense whenever N*D >= 128 even if D < 128.
    x2 = x.reshape(S, W)
    pe2 = pe_buffer.reshape(maxlen, D).astype(x.dtype)   # tiny; cast once

    itemsize = x.dtype.itemsize
    sub = _sublane_multiple(itemsize)
    ts = _pick_seq_tile(S, W, D, itemsize)

    # pe's BlockSpec needs its second-minor block dim to be a multiple of the
    # sublane tile or equal to pe's full row count; only in the tiny-S corner
    # case (ts == S, not a sublane multiple) do we fall back to slicing pe.
    if ts % sub != 0 and ts != maxlen:
        pe2 = pe2[:S]

    grid = (pl.cdiv(S, ts),)
    kernel = functools.partial(_posenc_kernel, p_drop=float(p_drop),
                               training=bool(training))
    seed_arr = jnp.asarray([int(seed) & 0x7FFFFFFF], jnp.int32)

    out2 = pl.pallas_call(
        kernel,
        out_shape=jax.ShapeDtypeStruct((S, W), x.dtype),
        grid_spec=pltpu.PrefetchScalarGridSpec(
            num_scalar_prefetch=1,               # dropout seed lives in SMEM
            grid=grid,
            in_specs=[
                pl.BlockSpec((ts, W), lambda i, seed_ref: (i, 0)),
                pl.BlockSpec((ts, D), lambda i, seed_ref: (i, 0)),
            ],
            out_specs=pl.BlockSpec((ts, W), lambda i, seed_ref: (i, 0)),
        ),
        compiler_params=pltpu.CompilerParams(
            # Seq tiles are independent -> shard across v7x's two TensorCores.
            dimension_semantics=("parallel",),
            # Generation-safe ceiling: fits v7x's 64 MiB VMEM; could be raised
            # (with the budget) on 128 MiB v5e/v6e parts for very long grids.
            vmem_limit_bytes=32 * 1024 * 1024,
        ),
    )(seed_arr, x2, pe2)
    return out2.reshape(S, N, D)


# ----------------------------------------------------------------------------
# Main: deterministic small-shape check
# ----------------------------------------------------------------------------
if __name__ == "__main__":
    S, N, D = 8, 2, 32          # seq=8, batch=2, d_model=32
    maxlen, p_drop = 128, 0.1

    key = jax.random.PRNGKey(0)
    x = jax.random.normal(key, (S, N, D), jnp.float32)
    pe_buf = make_pe_buffer(D, maxlen)

    # Eval mode (dropout = identity): exact check against the reference.
    out = jax.block_until_ready(
        positional_encoding_forward(x, pe_buf, p_drop=p_drop, training=False))
    ref = x + pe_buf[:S]
    assert out.shape == (S, N, D) and out.dtype == x.dtype
    assert jnp.allclose(out, ref, atol=1e-5, rtol=1e-5), \
        float(jnp.max(jnp.abs(out - ref)))

    # Training mode: every element is either 0 (dropped) or (x + pe)/(1 - p)
    # (kept), and the drop rate is sane.
    out_t = jax.block_until_ready(
        positional_encoding_forward(x, pe_buf, p_drop=p_drop, training=True,
                                    seed=123))
    scaled = ref / (1.0 - p_drop)
    is_zero = jnp.abs(out_t) <= 1e-6
    is_kept = jnp.abs(out_t - scaled) <= 1e-4 * (1.0 + jnp.abs(scaled))
    assert bool(jnp.all(is_zero | is_kept))
    frac_dropped = float(jnp.mean(is_zero.astype(jnp.float32)))
    assert 0.0 <= frac_dropped <= 0.5

    print("KERNEL_OK")
</pallas_src>

<mosaic_0001>
module attributes {stable_mosaic.version = 11 : i64} {
  func.func @_posenc_kernel(%arg0: i32, %arg1: memref<1xi32, #tpu.memory_space<smem>>, %arg2: memref<8x64xf32, #tpu.memory_space<vmem>>, %arg3: memref<8x32xf32, #tpu.memory_space<vmem>>, %arg4: memref<8x64xf32, #tpu.memory_space<vmem>>) attributes {dimension_semantics = [#tpu.dimension_semantics<parallel>], iteration_bounds = array<i64: 1>, scalar_prefetch = 1 : i64, scratch_operands = 0 : i64, tpu.core_type = #tpu.core_type<tc>, window_params = [{transform_indices = @transform_0, window_bounds = array<i64: 8, 64>}, {transform_indices = @transform_1, window_bounds = array<i64: 8, 32>}, {transform_indices = @transform_2, window_bounds = array<i64: 8, 64>}]} {
    %c0 = arith.constant 0 : index
    %c0_0 = arith.constant 0 : index
    %0 = vector.load %arg2[%c0, %c0_0] : memref<8x64xf32, #tpu.memory_space<vmem>>, vector<8x64xf32>
    %c0_1 = arith.constant 0 : index
    %c0_2 = arith.constant 0 : index
    %1 = vector.load %arg3[%c0_1, %c0_2] : memref<8x32xf32, #tpu.memory_space<vmem>>, vector<8x32xf32>
    %2 = tpu.concatenate %1, %1 in 1 : vector<8x32xf32>, vector<8x32xf32> -> vector<8x64xf32>
    %3 = arith.addf %0, %2 : vector<8x64xf32>
    %c0_3 = arith.constant 0 : index
    %c0_4 = arith.constant 0 : index
    %4 = vector.load %arg4[%c0_3, %c0_4] : memref<8x64xf32, #tpu.memory_space<vmem>>, vector<8x64xf32>
    tpu.vector_store %arg4[%c0_3, %c0_4], %3 {strides = array<i32>} : memref<8x64xf32, #tpu.memory_space<vmem>>, vector<8x64xf32>,
    return
  }
  func.func @transform_0(%arg0: i32, %arg1: memref<1xi32, #tpu.memory_space<smem>>) -> (i32, i32) {
    %c0_i32 = arith.constant 0 : i32
    %c0_i32_0 = arith.constant 0 : i32
    return %arg0, %c0_i32 : i32, i32
  }
  func.func @transform_1(%arg0: i32, %arg1: memref<1xi32, #tpu.memory_space<smem>>) -> (i32, i32) {
    %c0_i32 = arith.constant 0 : i32
    %c0_i32_0 = arith.constant 0 : i32
    return %arg0, %c0_i32 : i32, i32
  }
  func.func @transform_2(%arg0: i32, %arg1: memref<1xi32, #tpu.memory_space<smem>>) -> (i32, i32) {
    %c0_i32 = arith.constant 0 : i32
    %c0_i32_0 = arith.constant 0 : i32
    return %arg0, %c0_i32 : i32, i32
  }
}

</mosaic_0001>

<llo_original>
// kernel: tpu_custom_call.1
$region0: #{tpu_custom_call.1}
  #allocation0 [shape = 'u32[]', space=smem, size = 0x4, offset = 0x4, fixed_abs, tag = 'smem constant byte address 0x4 - core index']
  #allocation1 [shape = 'u32[144,128]{1,0:T(1,128)}', space=vmem, size = 0x12000, scoped, tag = 'internal scratch']
  #allocation2 [shape = 's32[1]{0}', space=sflag, size = 0x4, scoped, tag = 'scoped memory for tpu_custom_call.1']
  #allocation3 [shape = 's32[1]{0:T(128)S(6)}', space=smem, size = 0x200, scoped, tag = 'prefetched SMEM operand 0']
  %s0 = inlined_call_operand.<no memory space> [shape: s32[1], index: 0, kind: input, shape index: {}]
  %s1 = inlined_call_operand.vmem [shape: f32[8,64], index: 1, kind: input, shape index: {}]
  %s2 = inlined_call_operand.vmem [shape: f32[128,32], index: 2, kind: input, shape index: {}]
  %s3 = inlined_call_operand.hbm [shape: f32[8,64], index: 3, kind: output, shape index: {}]
  %s4 = sld [smem:[#allocation0]]
  $region18: #{tpu_custom_call.1} parent=0
    _
  %s6 = ssub.s32 1, %s4
  %s7 = scalar_select 0, %s6, %s4
  %8 = sst [smem:[#allocation3]] %s0
  $region1: #{tpu_custom_call.1} parent=0
    #allocation4 [shape = 'u8[4096]{0}', space=vmem, size = 0x1000, scoped, tag = 'output window, operand 0, single buffered']
    #allocation5 [shape = 's32[1]{0}', space=sflag, size = 0x4, scoped, tag = 'scoped memory for tpu_custom_call.1']
    %9 = vsyncpa [#allocation5], 0
    // Predicated region
    $region2: #{tpu_custom_call.1} parent=1 // pred_check
      _
    $region3: #{tpu_custom_call.1} parent=1 // pred_check_branch
      %11 = sbr.rel (0) target = $region5
    $region4: #{tpu_custom_call.1} parent=1 // pred_region
      _
    $region5: #{tpu_custom_call.1} parent=1 // pred_fallthru
      _
    // Predicated region
    $region6: #{tpu_custom_call.1} parent=1 // pred_check
      _
    $region7: #{tpu_custom_call.1} parent=1 // pred_check_branch
      %13 = sbr.rel (0) target = $region9
    $region8: #{tpu_custom_call.1} parent=1 // pred_region
      _
    $region9: #{tpu_custom_call.1} parent=1 // pred_fallthru
      _
    %v14 = vld [vmem:[%s1] sm:$0xff]
    %v15 = vld [vmem:[%s2] sm:$0xff]
    %17 = vrot.lane.b32.xlu0 %v15, 32
    %v18 = vpop.permute.xlu0 %17
    %vm20 = vcmask 261120
    %v21 = vsel %vm20, %v15, %v18
    %v22 = vadd.f32 %v14, %v21
    %vm23 = vcmask 523264
    %24 = vst.msk [vmem:[#allocation4] sm:$0xff] %vm23, %v22
    // Predicated region
    $region10: #{tpu_custom_call.1} parent=1 // pred_check
      _
    $region11: #{tpu_custom_call.1} parent=1 // pred_check_branch
      %26 = sbr.rel (0) target = $region13
    $region12: #{tpu_custom_call.1} parent=1 // pred_region
      %s28 = ssub.s32 128, 128
      %29 = vsyncadd [#allocation5], %s28
      %s31 = sshll.u32 [#allocation4], 4
      %s32 = int_to_ptr.vmem [resolvable:$true] %s31
      %34 = dma.vmem_to_hbm [thread:$0]  %s32, 128, %s3, [#allocation5]
    $region13: #{tpu_custom_call.1} parent=1 // pred_fallthru
      _
    // Predicated region
    $region14: #{tpu_custom_call.1} parent=1 // pred_check
      _
    $region15: #{tpu_custom_call.1} parent=1 // pred_check_branch
      %36 = sbr.rel (0) target = $region17
    $region16: #{tpu_custom_call.1} parent=1 // pred_region
      %37 = dma.done [#allocation5], 128
    $region17: #{tpu_custom_call.1} parent=1 // pred_fallthru
      _
    %38 = vsyncpa [#allocation5], 1

</llo_original>
